<compile_context>
chip_gen: v7x
topology: tpu7x:2x2x1
jax: 0.10.0
libtpu: 0.0.40
codegen_flags: <defaults>
</compile_context>

<pallas_src>
import functools

import jax
import jax.numpy as jnp
from jax.experimental import pallas as pl
from jax.experimental.pallas import tpu as pltpu

LN_EPS = 1e-5    # torch.nn.LayerNorm default
LANES = 128      # TPU lane width; all feature dims are padded to this


def _round_up(x, m):
    return ((x + m - 1) // m) * m


# --------------------------------------------------------------------------
# Kernel
# --------------------------------------------------------------------------
def _masked_layernorm(x, gamma, beta, n_true, mask):
    """LayerNorm over the first `n_true` lanes of a 128-lane-padded tensor.

    Assumes padded lanes of `x` are exactly zero (guaranteed by zero-padded
    weights/biases), so the lane-sum equals the true-feature sum.  Variance is
    masked so padded lanes do not contribute (x - mu) != 0 terms.  Padded
    gamma/beta are zero, so padded output lanes are zero again.
    """
    inv_n = 1.0 / n_true
    mu = jnp.sum(x, axis=-1, keepdims=True) * inv_n
    diff = (x - mu) * mask
    var = jnp.sum(diff * diff, axis=-1, keepdims=True) * inv_n
    return (x - mu) * jax.lax.rsqrt(var + LN_EPS) * gamma + beta


def actor_kernel(state_ref, w1_ref, w2_ref, wmu_ref, vec_ref, out_ref,
                 *, fc1_dims, fc2_dims):
    # Lane masks for masked LayerNorm (cheap VPU iota + compare).
    lane = jax.lax.broadcasted_iota(jnp.int32, (1, LANES), 1)
    mask1 = (lane < fc1_dims).astype(jnp.float32)
    mask2 = (lane < fc2_dims).astype(jnp.float32)

    # Packed per-feature vectors: one (8, 128) tile, read rows.
    b1 = vec_ref[0:1, :]
    g1 = vec_ref[1:2, :]
    be1 = vec_ref[2:3, :]
    b2 = vec_ref[3:4, :]
    g2 = vec_ref[4:5, :]
    be2 = vec_ref[5:6, :]
    bmu = vec_ref[6:7, :]

    # ----- fc1 -> LayerNorm -> relu ---------------------------------------
    x = jnp.dot(state_ref[...], w1_ref[...],
                preferred_element_type=jnp.float32) + b1
    x = _masked_layernorm(x, g1, be1, float(fc1_dims), mask1)
    x = jnp.maximum(x, 0.0)

    # ----- fc2 -> LayerNorm -> relu ---------------------------------------
    x = jnp.dot(x, w2_ref[...],
                preferred_element_type=jnp.float32) + b2
    x = _masked_layernorm(x, g2, be2, float(fc2_dims), mask2)
    x = jnp.maximum(x, 0.0)

    # ----- mu head -> tanh (lane-dense 128-wide output) --------------------
    m = jnp.dot(x, wmu_ref[...],
                preferred_element_type=jnp.float32) + bmu
    out_ref[...] = jnp.tanh(m)


# --------------------------------------------------------------------------
# Wrapper
# --------------------------------------------------------------------------
def actor_forward(state, packed, *, tile_b=512):
    """Fused actor forward.  `packed` comes from pack_params()."""
    B, in_dims = state.shape
    n_actions = packed["n_actions"]
    fc1_dims = packed["fc1_dims"]
    fc2_dims = packed["fc2_dims"]

    # Pad batch to a multiple of 8 (sublanes) and pick a batch tile.
    b_pad = max(8, _round_up(B, 8))
    tb = min(tile_b, b_pad)
    b_pad = _round_up(b_pad, tb)

    # Pad state to [b_pad, 128] lanes (zero padding).
    state_p = jnp.zeros((b_pad, LANES), jnp.float32)
    state_p = state_p.at[:B, :in_dims].set(state.astype(jnp.float32))

    grid = (pl.cdiv(b_pad, tb),)

    out = pl.pallas_call(
        functools.partial(actor_kernel, fc1_dims=fc1_dims, fc2_dims=fc2_dims),
        out_shape=jax.ShapeDtypeStruct((b_pad, LANES), jnp.float32),
        grid=grid,
        in_specs=[
            pl.BlockSpec((tb, LANES), lambda i: (i, 0)),       # state (streamed)
            pl.BlockSpec((LANES, LANES), lambda i: (0, 0)),    # w1 (resident)
            pl.BlockSpec((LANES, LANES), lambda i: (0, 0)),    # w2 (resident)
            pl.BlockSpec((LANES, LANES), lambda i: (0, 0)),    # w_mu (resident)
            pl.BlockSpec((8, LANES), lambda i: (0, 0)),        # packed vectors
        ],
        out_specs=pl.BlockSpec((tb, LANES), lambda i: (i, 0)),
        compiler_params=pltpu.CompilerParams(
            dimension_semantics=("parallel",)),                # v7x megacore
    )(state_p, packed["w1"], packed["w2"], packed["wmu"], packed["vec"])

    return out[:B, :n_actions]


# --------------------------------------------------------------------------
# Params: PyTorch-style init + packing/padding for the kernel
# --------------------------------------------------------------------------
def init_params(key, input_dims, fc1_dims, fc2_dims, n_actions):
    """Mirrors ActorNetwork.__init__ init ranges.  Weights stored [in, out]."""
    ks = jax.random.split(key, 6)
    f1 = 1.0 / jnp.sqrt(fc1_dims)   # torch: 1/sqrt(weight.size()[0]) = out_features
    f2 = 1.0 / jnp.sqrt(fc2_dims)
    f3 = 0.003
    u = lambda k, shape, b: jax.random.uniform(k, shape, jnp.float32, -b, b)
    return {
        "w1": u(ks[0], (input_dims, fc1_dims), f1),
        "b1": u(ks[1], (1, fc1_dims), f1),
        "g1": jnp.ones((1, fc1_dims), jnp.float32),
        "be1": jnp.zeros((1, fc1_dims), jnp.float32),
        "w2": u(ks[2], (fc1_dims, fc2_dims), f2),
        "b2": u(ks[3], (1, fc2_dims), f2),
        "g2": jnp.ones((1, fc2_dims), jnp.float32),
        "be2": jnp.zeros((1, fc2_dims), jnp.float32),
        "wmu": u(ks[4], (fc2_dims, n_actions), f3),
        "bmu": u(ks[5], (1, n_actions), f3),
    }


def pack_params(p):
    """Zero-pad all feature dims to 128 lanes and pack the seven small
    per-feature vectors into a single (8, 128) array (one DMA)."""
    in_dims, fc1_dims = p["w1"].shape
    fc2_dims = p["w2"].shape[1]
    n_actions = p["wmu"].shape[1]
    assert max(in_dims, fc1_dims, fc2_dims, n_actions) <= LANES, \
        "feature dims > 128 would need multi-tile padding"

    def pad2(w):
        out = jnp.zeros((LANES, LANES), jnp.float32)
        return out.at[:w.shape[0], :w.shape[1]].set(w)

    vec = jnp.zeros((8, LANES), jnp.float32)
    vec = vec.at[0, :fc1_dims].set(p["b1"][0])
    vec = vec.at[1, :fc1_dims].set(p["g1"][0])
    vec = vec.at[2, :fc1_dims].set(p["be1"][0])
    vec = vec.at[3, :fc2_dims].set(p["b2"][0])
    vec = vec.at[4, :fc2_dims].set(p["g2"][0])
    vec = vec.at[5, :fc2_dims].set(p["be2"][0])
    vec = vec.at[6, :n_actions].set(p["bmu"][0])
    # row 7 unused (keeps an (8, 128) sublane-aligned tile)

    return {
        "w1": pad2(p["w1"]),
        "w2": pad2(p["w2"]),
        "wmu": pad2(p["wmu"]),
        "vec": vec,
        "fc1_dims": fc1_dims,
        "fc2_dims": fc2_dims,
        "n_actions": n_actions,
    }


# --------------------------------------------------------------------------
# Pure-JAX reference (unpadded) for correctness checks
# --------------------------------------------------------------------------
def _layernorm_ref(x, gamma, beta):
    mu = jnp.mean(x, axis=-1, keepdims=True)
    var = jnp.mean((x - mu) * (x - mu), axis=-1, keepdims=True)
    return (x - mu) * jax.lax.rsqrt(var + LN_EPS) * gamma + beta


def actor_forward_ref(state, p):
    x = state @ p["w1"] + p["b1"]
    x = jnp.maximum(_layernorm_ref(x, p["g1"], p["be1"]), 0.0)
    x = x @ p["w2"] + p["b2"]
    x = jnp.maximum(_layernorm_ref(x, p["g2"], p["be2"]), 0.0)
    return jnp.tanh(x @ p["wmu"] + p["bmu"])


if __name__ == "__main__":
    B, INPUT_DIMS, FC1, FC2, N_ACTIONS = 8, 32, 64, 32, 4

    key = jax.random.PRNGKey(0)
    k_state, k_params = jax.random.split(key, 2)
    state = jax.random.normal(k_state, (B, INPUT_DIMS), jnp.float32)
    params = init_params(k_params, INPUT_DIMS, FC1, FC2, N_ACTIONS)
    packed = pack_params(params)

    out = actor_forward(state, packed)
    out = jax.block_until_ready(out)

    ref = actor_forward_ref(state, params)
    assert out.shape == (B, N_ACTIONS), out.shape
    assert jnp.allclose(out, ref, atol=1e-5, rtol=1e-5), (out, ref)

    print("KERNEL_OK")
</pallas_src>

<mosaic_0001>
module attributes {stable_mosaic.version = 11 : i64} {
  func.func @actor_kernel(%arg0: i32, %arg1: memref<8x128xf32, #tpu.memory_space<vmem>>, %arg2: memref<128x128xf32, #tpu.memory_space<vmem>>, %arg3: memref<128x128xf32, #tpu.memory_space<vmem>>, %arg4: memref<128x128xf32, #tpu.memory_space<vmem>>, %arg5: memref<8x128xf32, #tpu.memory_space<vmem>>, %arg6: memref<8x128xf32, #tpu.memory_space<vmem>>) attributes {dimension_semantics = [#tpu.dimension_semantics<parallel>], iteration_bounds = array<i64: 1>, scalar_prefetch = 0 : i64, scratch_operands = 0 : i64, tpu.core_type = #tpu.core_type<tc>, window_params = [{transform_indices = @transform_0, window_bounds = array<i64: 8, 128>}, {pipeline_mode = #tpu.pipeline_mode<synchronous>, transform_indices = @transform_1, window_bounds = array<i64: 128, 128>}, {pipeline_mode = #tpu.pipeline_mode<synchronous>, transform_indices = @transform_2, window_bounds = array<i64: 128, 128>}, {pipeline_mode = #tpu.pipeline_mode<synchronous>, transform_indices = @transform_3, window_bounds = array<i64: 128, 128>}, {pipeline_mode = #tpu.pipeline_mode<synchronous>, transform_indices = @transform_4, window_bounds = array<i64: 8, 128>}, {transform_indices = @transform_5, window_bounds = array<i64: 8, 128>}]} {
    %0 = tpu.iota {dimensions = array<i32: 1>} : vector<1x128xi32>
    %c64_i32 = arith.constant 64 : i32
    %1 = vector.broadcast %c64_i32 : i32 to vector<1x128xi32>
    %2 = arith.cmpi slt, %0, %1 : vector<1x128xi32>
    %3 = arith.extui %2 : vector<1x128xi1> to vector<1x128xi32>
    %4 = arith.sitofp %3 : vector<1x128xi32> to vector<1x128xf32>
    %c32_i32 = arith.constant 32 : i32
    %5 = vector.broadcast %c32_i32 : i32 to vector<1x128xi32>
    %6 = arith.cmpi slt, %0, %5 : vector<1x128xi32>
    %7 = arith.extui %6 : vector<1x128xi1> to vector<1x128xi32>
    %8 = arith.sitofp %7 : vector<1x128xi32> to vector<1x128xf32>
    %c0 = arith.constant 0 : index
    %c0_0 = arith.constant 0 : index
    %9 = vector.load %arg5[%c0, %c0_0] : memref<8x128xf32, #tpu.memory_space<vmem>>, vector<1x128xf32>
    %c1 = arith.constant 1 : index
    %c0_1 = arith.constant 0 : index
    %10 = vector.load %arg5[%c1, %c0_1] : memref<8x128xf32, #tpu.memory_space<vmem>>, vector<1x128xf32>
    %c2 = arith.constant 2 : index
    %c0_2 = arith.constant 0 : index
    %11 = vector.load %arg5[%c2, %c0_2] : memref<8x128xf32, #tpu.memory_space<vmem>>, vector<1x128xf32>
    %c3 = arith.constant 3 : index
    %c0_3 = arith.constant 0 : index
    %12 = vector.load %arg5[%c3, %c0_3] : memref<8x128xf32, #tpu.memory_space<vmem>>, vector<1x128xf32>
    %c4 = arith.constant 4 : index
    %c0_4 = arith.constant 0 : index
    %13 = vector.load %arg5[%c4, %c0_4] : memref<8x128xf32, #tpu.memory_space<vmem>>, vector<1x128xf32>
    %c5 = arith.constant 5 : index
    %c0_5 = arith.constant 0 : index
    %14 = vector.load %arg5[%c5, %c0_5] : memref<8x128xf32, #tpu.memory_space<vmem>>, vector<1x128xf32>
    %c6 = arith.constant 6 : index
    %c0_6 = arith.constant 0 : index
    %15 = vector.load %arg5[%c6, %c0_6] : memref<8x128xf32, #tpu.memory_space<vmem>>, vector<1x128xf32>
    %c0_7 = arith.constant 0 : index
    %c0_8 = arith.constant 0 : index
    %16 = vector.load %arg1[%c0_7, %c0_8] : memref<8x128xf32, #tpu.memory_space<vmem>>, vector<8x128xf32>
    %c0_9 = arith.constant 0 : index
    %c0_10 = arith.constant 0 : index
    %17 = vector.load %arg2[%c0_9, %c0_10] : memref<128x128xf32, #tpu.memory_space<vmem>>, vector<128x128xf32>
    %cst = arith.constant dense<0.000000e+00> : vector<8x128xf32>
    %18 = tpu.matmul %16, %17, %cst {dimension_numbers = #tpu.dot_dimension_numbers<[1], [0], [0], [1], [0, 0, 1, 1], [], []>} : vector<8x128xf32>, vector<128x128xf32>, vector<8x128xf32> -> vector<8x128xf32>
    %19 = vector.broadcast %9 : vector<1x128xf32> to vector<8x128xf32>
    %20 = arith.addf %18, %19 : vector<8x128xf32>
    %cst_11 = arith.constant dense<0.000000e+00> : vector<8xf32>
    %21 = vector.multi_reduction <add>, %20, %cst_11 [1] : vector<8x128xf32> to vector<8xf32>
    %22 = vector.shape_cast %21 : vector<8xf32> to vector<8x1xf32>
    %cst_12 = arith.constant 1.562500e-02 : f32
    %23 = vector.broadcast %cst_12 : f32 to vector<8x1xf32>
    %24 = arith.mulf %22, %23 : vector<8x1xf32>
    %25 = vector.broadcast %24 : vector<8x1xf32> to vector<8x128xf32>
    %26 = arith.subf %20, %25 : vector<8x128xf32>
    %27 = vector.broadcast %4 : vector<1x128xf32> to vector<8x128xf32>
    %28 = arith.mulf %26, %27 : vector<8x128xf32>
    %29 = arith.mulf %28, %28 : vector<8x128xf32>
    %cst_13 = arith.constant dense<0.000000e+00> : vector<8xf32>
    %30 = vector.multi_reduction <add>, %29, %cst_13 [1] : vector<8x128xf32> to vector<8xf32>
    %31 = vector.shape_cast %30 : vector<8xf32> to vector<8x1xf32>
    %cst_14 = arith.constant 1.562500e-02 : f32
    %32 = vector.broadcast %cst_14 : f32 to vector<8x1xf32>
    %33 = arith.mulf %31, %32 : vector<8x1xf32>
    %34 = vector.broadcast %24 : vector<8x1xf32> to vector<8x128xf32>
    %35 = arith.subf %20, %34 : vector<8x128xf32>
    %cst_15 = arith.constant 9.99999974E-6 : f32
    %36 = vector.broadcast %cst_15 : f32 to vector<8x1xf32>
    %37 = arith.addf %33, %36 : vector<8x1xf32>
    %38 = math.rsqrt %37 : vector<8x1xf32>
    %39 = vector.broadcast %38 : vector<8x1xf32> to vector<8x128xf32>
    %40 = arith.mulf %35, %39 : vector<8x128xf32>
    %41 = vector.broadcast %10 : vector<1x128xf32> to vector<8x128xf32>
    %42 = arith.mulf %40, %41 : vector<8x128xf32>
    %43 = vector.broadcast %11 : vector<1x128xf32> to vector<8x128xf32>
    %44 = arith.addf %42, %43 : vector<8x128xf32>
    %cst_16 = arith.constant 0.000000e+00 : f32
    %45 = vector.broadcast %cst_16 : f32 to vector<8x128xf32>
    %46 = arith.maximumf %44, %45 : vector<8x128xf32>
    %c0_17 = arith.constant 0 : index
    %c0_18 = arith.constant 0 : index
    %47 = vector.load %arg3[%c0_17, %c0_18] : memref<128x128xf32, #tpu.memory_space<vmem>>, vector<128x128xf32>
    %cst_19 = arith.constant dense<0.000000e+00> : vector<8x128xf32>
    %48 = tpu.matmul %46, %47, %cst_19 {dimension_numbers = #tpu.dot_dimension_numbers<[1], [0], [0], [1], [0, 0, 1, 1], [], []>} : vector<8x128xf32>, vector<128x128xf32>, vector<8x128xf32> -> vector<8x128xf32>
    %49 = vector.broadcast %12 : vector<1x128xf32> to vector<8x128xf32>
    %50 = arith.addf %48, %49 : vector<8x128xf32>
    %cst_20 = arith.constant dense<0.000000e+00> : vector<8xf32>
    %51 = vector.multi_reduction <add>, %50, %cst_20 [1] : vector<8x128xf32> to vector<8xf32>
    %52 = vector.shape_cast %51 : vector<8xf32> to vector<8x1xf32>
    %cst_21 = arith.constant 3.125000e-02 : f32
    %53 = vector.broadcast %cst_21 : f32 to vector<8x1xf32>
    %54 = arith.mulf %52, %53 : vector<8x1xf32>
    %55 = vector.broadcast %54 : vector<8x1xf32> to vector<8x128xf32>
    %56 = arith.subf %50, %55 : vector<8x128xf32>
    %57 = vector.broadcast %8 : vector<1x128xf32> to vector<8x128xf32>
    %58 = arith.mulf %56, %57 : vector<8x128xf32>
    %59 = arith.mulf %58, %58 : vector<8x128xf32>
    %cst_22 = arith.constant dense<0.000000e+00> : vector<8xf32>
    %60 = vector.multi_reduction <add>, %59, %cst_22 [1] : vector<8x128xf32> to vector<8xf32>
    %61 = vector.shape_cast %60 : vector<8xf32> to vector<8x1xf32>
    %cst_23 = arith.constant 3.125000e-02 : f32
    %62 = vector.broadcast %cst_23 : f32 to vector<8x1xf32>
    %63 = arith.mulf %61, %62 : vector<8x1xf32>
    %64 = vector.broadcast %54 : vector<8x1xf32> to vector<8x128xf32>
    %65 = arith.subf %50, %64 : vector<8x128xf32>
    %cst_24 = arith.constant 9.99999974E-6 : f32
    %66 = vector.broadcast %cst_24 : f32 to vector<8x1xf32>
    %67 = arith.addf %63, %66 : vector<8x1xf32>
    %68 = math.rsqrt %67 : vector<8x1xf32>
    %69 = vector.broadcast %68 : vector<8x1xf32> to vector<8x128xf32>
    %70 = arith.mulf %65, %69 : vector<8x128xf32>
    %71 = vector.broadcast %13 : vector<1x128xf32> to vector<8x128xf32>
    %72 = arith.mulf %70, %71 : vector<8x128xf32>
    %73 = vector.broadcast %14 : vector<1x128xf32> to vector<8x128xf32>
    %74 = arith.addf %72, %73 : vector<8x128xf32>
    %cst_25 = arith.constant 0.000000e+00 : f32
    %75 = vector.broadcast %cst_25 : f32 to vector<8x128xf32>
    %76 = arith.maximumf %74, %75 : vector<8x128xf32>
    %c0_26 = arith.constant 0 : index
    %c0_27 = arith.constant 0 : index
    %77 = vector.load %arg4[%c0_26, %c0_27] : memref<128x128xf32, #tpu.memory_space<vmem>>, vector<128x128xf32>
    %cst_28 = arith.constant dense<0.000000e+00> : vector<8x128xf32>
    %78 = tpu.matmul %76, %77, %cst_28 {dimension_numbers = #tpu.dot_dimension_numbers<[1], [0], [0], [1], [0, 0, 1, 1], [], []>} : vector<8x128xf32>, vector<128x128xf32>, vector<8x128xf32> -> vector<8x128xf32>
    %79 = vector.broadcast %15 : vector<1x128xf32> to vector<8x128xf32>
    %80 = arith.addf %78, %79 : vector<8x128xf32>
    %81 = math.tanh %80 : vector<8x128xf32>
    %c0_29 = arith.constant 0 : index
    %c0_30 = arith.constant 0 : index
    %82 = vector.load %arg6[%c0_29, %c0_30] : memref<8x128xf32, #tpu.memory_space<vmem>>, vector<8x128xf32>
    tpu.vector_store %arg6[%c0_29, %c0_30], %81 {strides = array<i32>} : memref<8x128xf32, #tpu.memory_space<vmem>>, vector<8x128xf32>,
    return
  }
  func.func @transform_0(%arg0: i32) -> (i32, i32) {
    %c0_i32 = arith.constant 0 : i32
    %c0_i32_0 = arith.constant 0 : i32
    return %arg0, %c0_i32 : i32, i32
  }
  func.func @transform_1(%arg0: i32) -> (i32, i32) {
    %c0_i32 = arith.constant 0 : i32
    %c0_i32_0 = arith.constant 0 : i32
    %c0_i32_1 = arith.constant 0 : i32
    return %c0_i32, %c0_i32_0 : i32, i32
  }
  func.func @transform_2(%arg0: i32) -> (i32, i32) {
    %c0_i32 = arith.constant 0 : i32
    %c0_i32_0 = arith.constant 0 : i32
    %c0_i32_1 = arith.constant 0 : i32
    return %c0_i32, %c0_i32_0 : i32, i32
  }
  func.func @transform_3(%arg0: i32) -> (i32, i32) {
    %c0_i32 = arith.constant 0 : i32
    %c0_i32_0 = arith.constant 0 : i32
    %c0_i32_1 = arith.constant 0 : i32
    return %c0_i32, %c0_i32_0 : i32, i32
  }
  func.func @transform_4(%arg0: i32) -> (i32, i32) {
    %c0_i32 = arith.constant 0 : i32
    %c0_i32_0 = arith.constant 0 : i32
    %c0_i32_1 = arith.constant 0 : i32
    return %c0_i32, %c0_i32_0 : i32, i32
  }
  func.func @transform_5(%arg0: i32) -> (i32, i32) {
    %c0_i32 = arith.constant 0 : i32
    %c0_i32_0 = arith.constant 0 : i32
    return %arg0, %c0_i32 : i32, i32
  }
}

</mosaic_0001>

<llo_original>
// kernel: tpu_custom_call.1
$region0: #{tpu_custom_call.1}
  #allocation0 [shape = 'u32[]', space=smem, size = 0x4, offset = 0x4, fixed_abs, tag = 'smem constant byte address 0x4 - core index']
  #allocation1 [shape = 'u32[144,128]{1,0:T(1,128)}', space=vmem, size = 0x12000, scoped, tag = 'internal scratch']
  %s0 = inlined_call_operand.hbm [shape: f32[8,128], index: 0, kind: input, shape index: {}]
  %s1 = inlined_call_operand.hbm [shape: f32[128,128], index: 1, kind: input, shape index: {}]
  %s2 = inlined_call_operand.hbm [shape: f32[128,128], index: 2, kind: input, shape index: {}]
  %s3 = inlined_call_operand.hbm [shape: f32[128,128], index: 3, kind: input, shape index: {}]
  %s4 = inlined_call_operand.vmem [shape: f32[8,128], index: 4, kind: input, shape index: {}]
  %s5 = inlined_call_operand.hbm [shape: f32[8,128], index: 5, kind: output, shape index: {}]
  %s6 = sld [smem:[#allocation0]]
  $region46: #{tpu_custom_call.1} parent=0
    _
  %s8 = ssub.s32 1, %s6
  %s9 = scalar_select 0, %s8, %s6
  $region1: #{tpu_custom_call.1} parent=0
    #allocation2 [shape = 'u8[4096]{0}', space=vmem, size = 0x1000, scoped, tag = 'input window, operand 0, single buffered']
    #allocation3 [shape = 's32[1]{0}', space=sflag, size = 0x4, scoped, tag = 'scoped memory for tpu_custom_call.1']
    #allocation4 [shape = 's32[1]{0}', space=sflag, size = 0x4, scoped, tag = 'scoped memory for tpu_custom_call.1']
    #allocation5 [shape = 'u8[65536]{0}', space=vmem, size = 0x10000, scoped, tag = 'input window, operand 1, single buffered']
    #allocation6 [shape = 's32[1]{0}', space=sflag, size = 0x4, scoped, tag = 'scoped memory for tpu_custom_call.1']
    #allocation7 [shape = 'u8[65536]{0}', space=vmem, size = 0x10000, scoped, tag = 'input window, operand 2, single buffered']
    #allocation8 [shape = 'u8[65536]{0}', space=vmem, size = 0x10000, scoped, tag = 'input window, operand 3, single buffered']
    #allocation9 [shape = 's32[1]{0}', space=sflag, size = 0x4, scoped, tag = 'scoped memory for tpu_custom_call.1']
    #allocation10 [shape = 'u8[4096]{0}', space=vmem, size = 0x1000, scoped, tag = 'output window, operand 0, single buffered']
    %10 = vsyncpa [#allocation3], 0
    %11 = vsyncpa [#allocation6], 0
    %12 = vsyncpa [#allocation9], 0
    %13 = vsyncpa [#allocation4], 0
    // Predicated region
    $region2: #{tpu_custom_call.1} parent=1 // pred_check
      _
    $region3: #{tpu_custom_call.1} parent=1 // pred_check_branch
      %15 = sbr.rel (0) target = $region5
    $region4: #{tpu_custom_call.1} parent=1 // pred_region
      %s17 = ssub.s32 128, 128
      %18 = vsyncadd [#allocation3], %s17
      %s20 = sshll.u32 [#allocation2], 4
      %s21 = int_to_ptr.vmem [resolvable:$true] %s20
      %23 = dma.hbm_to_vmem [thread:$0]  %s0, 128, %s21, [#allocation3]
    $region5: #{tpu_custom_call.1} parent=1 // pred_fallthru
      _
    // Predicated region
    $region6: #{tpu_custom_call.1} parent=1 // pred_check
      _
    $region7: #{tpu_custom_call.1} parent=1 // pred_check_branch
      %25 = sbr.rel (0) target = $region9
    $region8: #{tpu_custom_call.1} parent=1 // pred_region
      %s27 = ssub.s32 2048, 2048
      %28 = vsyncadd [#allocation6], %s27
      %s29 = sshll.u32 [#allocation5], 4
      %s30 = int_to_ptr.vmem [resolvable:$true] %s29
      %35 = dma.hbm_to_vmem [thread:$0]  %s1, 2048, %s30, [#allocation6], 128, 128, 8
    $region9: #{tpu_custom_call.1} parent=1 // pred_fallthru
      _
    // Predicated region
    $region10: #{tpu_custom_call.1} parent=1 // pred_check
      _
    $region11: #{tpu_custom_call.1} parent=1 // pred_check_branch
      %37 = sbr.rel (0) target = $region13
    $region12: #{tpu_custom_call.1} parent=1 // pred_region
      %s39 = ssub.s32 2048, 2048
      %40 = vsyncadd [#allocation6], %s39
      %s41 = sshll.u32 [#allocation7], 4
      %s42 = int_to_ptr.vmem [resolvable:$true] %s41
      %47 = dma.hbm_to_vmem [thread:$0]  %s2, 2048, %s42, [#allocation6], 128, 128, 8
    $region13: #{tpu_custom_call.1} parent=1 // pred_fallthru
      _
    // Predicated region
    $region14: #{tpu_custom_call.1} parent=1 // pred_check
      _
    $region15: #{tpu_custom_call.1} parent=1 // pred_check_branch
      %49 = sbr.rel (0) target = $region17
    $region16: #{tpu_custom_call.1} parent=1 // pred_region
      %s51 = ssub.s32 2048, 2048
      %52 = vsyncadd [#allocation9], %s51
      %s53 = sshll.u32 [#allocation8], 4
      %s54 = int_to_ptr.vmem [resolvable:$true] %s53
      %59 = dma.hbm_to_vmem [thread:$0]  %s3, 2048, %s54, [#allocation9], 128, 128, 8
    $region17: #{tpu_custom_call.1} parent=1 // pred_fallthru
      _
    // Predicated region
    $region18: #{tpu_custom_call.1} parent=1 // pred_check
      _
    $region19: #{tpu_custom_call.1} parent=1 // pred_check_branch
      %61 = sbr.rel (0) target = $region21
    $region20: #{tpu_custom_call.1} parent=1 // pred_region
      _
    $region21: #{tpu_custom_call.1} parent=1 // pred_fallthru
      _
    // Predicated region
    $region22: #{tpu_custom_call.1} parent=1 // pred_check
      _
    $region23: #{tpu_custom_call.1} parent=1 // pred_check_branch
      %63 = sbr.rel (0) target = $region25
    $region24: #{tpu_custom_call.1} parent=1 // pred_region
      %64 = dma.done [#allocation3], 128
    $region25: #{tpu_custom_call.1} parent=1 // pred_fallthru
      _
    // Predicated region
    $region26: #{tpu_custom_call.1} parent=1 // pred_check
      _
    $region27: #{tpu_custom_call.1} parent=1 // pred_check_branch
      %66 = sbr.rel (0) target = $region29
    $region28: #{tpu_custom_call.1} parent=1 // pred_region
      %67 = dma.done [#allocation6], 2048
    $region29: #{tpu_custom_call.1} parent=1 // pred_fallthru
      _
    // Predicated region
    $region30: #{tpu_custom_call.1} parent=1 // pred_check
      _
    $region31: #{tpu_custom_call.1} parent=1 // pred_check_branch
      %69 = sbr.rel (0) target = $region33
    $region32: #{tpu_custom_call.1} parent=1 // pred_region
      %70 = dma.done [#allocation6], 2048
    $region33: #{tpu_custom_call.1} parent=1 // pred_fallthru
      _
    // Predicated region
    $region34: #{tpu_custom_call.1} parent=1 // pred_check
      _
    $region35: #{tpu_custom_call.1} parent=1 // pred_check_branch
      %72 = sbr.rel (0) target = $region37
    $region36: #{tpu_custom_call.1} parent=1 // pred_region
      %73 = dma.done [#allocation9], 2048
    $region37: #{tpu_custom_call.1} parent=1 // pred_fallthru
      _
    %v74 = vlaneseq
    %v75 = vand.u32 %v74, 127
    %vm76 = vcmp.lt.s32.totalorder %v75, 64
    %v77 = vsel %vm76, 1, 0
    %v78 = vcvt.s32.f32 %v77
    %vm79 = vcmp.lt.s32.totalorder %v75, 32
    %v80 = vsel %vm79, 1, 0
    %v81 = vcvt.s32.f32 %v80
    %v82 = vld [vmem:[%s4] sm:$0x1]
    %v83 = vld [vmem:[%s4 + $0x1] sm:$0x1]
    %v84 = vld [vmem:[%s4 + $0x2] sm:$0x1]
    %v85 = vld [vmem:[%s4 + $0x3] sm:$0x1]
    %v86 = vld [vmem:[%s4 + $0x4] sm:$0x1]
    %v87 = vld [vmem:[%s4 + $0x5] sm:$0x1]
    %v88 = vld [vmem:[%s4 + $0x6] sm:$0x1]
    %v89 = vld [vmem:[#allocation2] sm:$0xff]
    %v90 = vld [vmem:[#allocation5] sm:$0xff]
    %v91 = vld [vmem:[#allocation5 + $0x8] sm:$0xff]
    %v92 = vld [vmem:[#allocation5 + $0x10] sm:$0xff]
    %v93 = vld [vmem:[#allocation5 + $0x18] sm:$0xff]
    %v94 = vld [vmem:[#allocation5 + $0x20] sm:$0xff]
    %v95 = vld [vmem:[#allocation5 + $0x28] sm:$0xff]
    %v96 = vld [vmem:[#allocation5 + $0x30] sm:$0xff]
    %v97 = vld [vmem:[#allocation5 + $0x38] sm:$0xff]
    %v98 = vld [vmem:[#allocation5 + $0x40] sm:$0xff]
    %v99 = vld [vmem:[#allocation5 + $0x48] sm:$0xff]
    %v100 = vld [vmem:[#allocation5 + $0x50] sm:$0xff]
    %v101 = vld [vmem:[#allocation5 + $0x58] sm:$0xff]
    %v102 = vld [vmem:[#allocation5 + $0x60] sm:$0xff]
    %v103 = vld [vmem:[#allocation5 + $0x68] sm:$0xff]
    %v104 = vld [vmem:[#allocation5 + $0x70] sm:$0xff]
    %v105 = vld [vmem:[#allocation5 + $0x78] sm:$0xff]
    %v106 = vlaneseq
    %v107 = vshrl.u32 %v106, 7
    %v108 = vsub.s32 0, %v107
    %v109 = vrot.slane %v82, %v108
    %110 = vmatprep.subr.mxu0 0.0
    %111 = vmatpush1.msra.mxu0 %v90
    %112 = vmatprep.subr.mxu0 0.0
    %113 = vmatpush1.msra.mxu0 %v91
    %114 = vmatprep.subr.mxu0 0.0
    %115 = vmatpush1.msra.mxu0 %v92
    %116 = vmatprep.subr.mxu0 0.0
    %117 = vmatpush1.msra.mxu0 %v93
    %118 = vmatprep.subr.mxu0 0.0
    %119 = vmatpush1.msra.mxu0 %v94
    %120 = vmatprep.subr.mxu0 0.0
    %121 = vmatpush1.msra.mxu0 %v95
    %122 = vmatprep.subr.mxu0 0.0
    %123 = vmatpush1.msra.mxu0 %v96
    %124 = vmatprep.subr.mxu0 0.0
    %125 = vmatpush1.msra.mxu0 %v97
    %126 = vmatprep.subr.mxu0 0.0
    %127 = vmatpush1.msra.mxu0 %v98
    %128 = vmatprep.subr.mxu0 0.0
    %129 = vmatpush1.msra.mxu0 %v99
    %130 = vmatprep.subr.mxu0 0.0
    %131 = vmatpush1.msra.mxu0 %v100
    %132 = vmatprep.subr.mxu0 0.0
    %133 = vmatpush1.msra.mxu0 %v101
    %134 = vmatprep.subr.mxu0 0.0
    %135 = vmatpush1.msra.mxu0 %v102
    %136 = vmatprep.subr.mxu0 0.0
    %137 = vmatpush1.msra.mxu0 %v103
    %138 = vmatprep.subr.mxu0 0.0
    %139 = vmatpush1.msra.mxu0 %v104
    %140 = vmatprep.subr.mxu0 0.0
    %141 = vmatpush1.msra.mxu0 %v105
    %142 = vmatprep.subr.mxu0 0.0
    %143 = vmatpush1.msra.mxu0 0.0
    %144 = vmatprep.subr.mxu0 0.0
    %145 = vmatpush1.msra.mxu0 0.0
    %146 = vmatprep.subr.mxu0 0.0
    %147 = vmatpush1.msra.mxu0 0.0
    %148 = vmatprep.subr.mxu0 0.0
    %149 = vmatpush1.msra.mxu0 0.0
    %150 = vmatprep.subr.mxu0 0.0
    %151 = vmatpush1.msra.mxu0 0.0
    %152 = vmatprep.subr.mxu0 0.0
    %153 = vmatpush1.msra.mxu0 0.0
    %154 = vmatprep.subr.mxu0 0.0
    %155 = vmatpush1.msra.mxu0 0.0
    %156 = vmatprep.subr.mxu0 0.0
    %157 = vmatpush1.msra.mxu0 0.0
    %158 = vmatprep.subr.mxu0 0.0
    %159 = vmatpush1.msra.mxu0 0.0
    %160 = vmatprep.subr.mxu0 0.0
    %161 = vmatpush1.msra.mxu0 0.0
    %162 = vmatprep.subr.mxu0 0.0
    %163 = vmatpush1.msra.mxu0 0.0
    %164 = vmatprep.subr.mxu0 0.0
    %165 = vmatpush1.msra.mxu0 0.0
    %166 = vmatprep.subr.mxu0 0.0
    %167 = vmatpush1.msra.mxu0 0.0
    %168 = vmatprep.subr.mxu0 0.0
    %169 = vmatpush1.msra.mxu0 0.0
    %170 = vmatprep.subr.mxu0 0.0
    %171 = vmatpush1.msra.mxu0 0.0
    %172 = vmatprep.subr.mxu0 0.0
    %173 = vmatpush1.msra.mxu0 0.0
    %174 = vmatprep.mubr.f32.mxu0 0.0
    %175 = vmatmul.mubr.f32.gmra.mrb[0].mxu0 %v89
    %v176 = vpop.f32.mrb[0].mxu0
    %v177 = vadd.f32 %v109, %v176
    %v178 = vpop.f32.mrb[0].mxu0
    %179 = vdwg.mxu0
    %180 = vadd.xlane.f32.xlu0 %v177
    %v181 = vpop.xlane.xlu0 %180
    %v182 = vmul.f32 %v181, 0.015625
    %v183 = vsub.f32 %v177, %v182
    %v184 = vmul.f32 %v183, %v78
    %v185 = vmul.f32 %v184, %v184
    %186 = vadd.xlane.f32.xlu0 %v185
    %v187 = vpop.xlane.xlu0 %186
    %v188 = vmul.f32 %v187, 0.015625
    %v189 = vadd.f32 %v188, 1e-05
    %v190 = vrsqrt.pop %v189
    %v191 = vmul.f32 %v183, %v190
    %v192 = vlaneseq
    %v193 = vshrl.u32 %v192, 7
    %v194 = vsub.s32 0, %v193
    %v195 = vrot.slane %v83, %v194
    %v196 = vmul.f32 %v191, %v195
    %v197 = vlaneseq
    %v198 = vshrl.u32 %v197, 7
    %v199 = vsub.s32 0, %v198
    %v200 = vrot.slane %v84, %v199
    %v201 = vadd.f32 %v196, %v200
    %v202 = vmax.f32 %v201, 0.0
    %v203 = vld [vmem:[#allocation7] sm:$0xff]
    %v204 = vld [vmem:[#allocation7 + $0x8] sm:$0xff]
    %v205 = vld [vmem:[#allocation7 + $0x10] sm:$0xff]
    %v206 = vld [vmem:[#allocation7 + $0x18] sm:$0xff]
    %v207 = vld [vmem:[#allocation7 + $0x20] sm:$0xff]
    %v208 = vld [vmem:[#allocation7 + $0x28] sm:$0xff]
    %v209 = vld [vmem:[#allocation7 + $0x30] sm:$0xff]
    %v210 = vld [vmem:[#allocation7 + $0x38] sm:$0xff]
    %v211 = vld [vmem:[#allocation7 + $0x40] sm:$0xff]
    %v212 = vld [vmem:[#allocation7 + $0x48] sm:$0xff]
    %v213 = vld [vmem:[#allocation7 + $0x50] sm:$0xff]
    %v214 = vld [vmem:[#allocation7 + $0x58] sm:$0xff]
    %v215 = vld [vmem:[#allocation7 + $0x60] sm:$0xff]
    %v216 = vld [vmem:[#allocation7 + $0x68] sm:$0xff]
    %v217 = vld [vmem:[#allocation7 + $0x70] sm:$0xff]
    %v218 = vld [vmem:[#allocation7 + $0x78] sm:$0xff]
    %v219 = vlaneseq
    %v220 = vshrl.u32 %v219, 7
    %v221 = vsub.s32 0, %v220
    %v222 = vrot.slane %v85, %v221
    %223 = vmatprep.subr.mxu0 0.0
    %224 = vmatpush1.msra.mxu0 %v203
    %225 = vmatprep.subr.mxu0 0.0
    %226 = vmatpush1.msra.mxu0 %v204
    %227 = vmatprep.subr.mxu0 0.0
    %228 = vmatpush1.msra.mxu0 %v205
    %229 = vmatprep.subr.mxu0 0.0
    %230 = vmatpush1.msra.mxu0 %v206
    %231 = vmatprep.subr.mxu0 0.0
    %232 = vmatpush1.msra.mxu0 %v207
    %233 = vmatprep.subr.mxu0 0.0
    %234 = vmatpush1.msra.mxu0 %v208
    %235 = vmatprep.subr.mxu0 0.0
    %236 = vmatpush1.msra.mxu0 %v209
    %237 = vmatprep.subr.mxu0 0.0
    %238 = vmatpush1.msra.mxu0 %v210
    %239 = vmatprep.subr.mxu0 0.0
    %240 = vmatpush1.msra.mxu0 %v211
    %241 = vmatprep.subr.mxu0 0.0
    %242 = vmatpush1.msra.mxu0 %v212
    %243 = vmatprep.subr.mxu0 0.0
    %244 = vmatpush1.msra.mxu0 %v213
    %245 = vmatprep.subr.mxu0 0.0
    %246 = vmatpush1.msra.mxu0 %v214
    %247 = vmatprep.subr.mxu0 0.0
    %248 = vmatpush1.msra.mxu0 %v215
    %249 = vmatprep.subr.mxu0 0.0
    %250 = vmatpush1.msra.mxu0 %v216
    %251 = vmatprep.subr.mxu0 0.0
    %252 = vmatpush1.msra.mxu0 %v217
    %253 = vmatprep.subr.mxu0 0.0
    %254 = vmatpush1.msra.mxu0 %v218
    %255 = vmatprep.subr.mxu0 0.0
    %256 = vmatpush1.msra.mxu0 0.0
    %257 = vmatprep.subr.mxu0 0.0
    %258 = vmatpush1.msra.mxu0 0.0
    %259 = vmatprep.subr.mxu0 0.0
    %260 = vmatpush1.msra.mxu0 0.0
    %261 = vmatprep.subr.mxu0 0.0
    %262 = vmatpush1.msra.mxu0 0.0
    %263 = vmatprep.subr.mxu0 0.0
    %264 = vmatpush1.msra.mxu0 0.0
    %265 = vmatprep.subr.mxu0 0.0
    %266 = vmatpush1.msra.mxu0 0.0
    %267 = vmatprep.subr.mxu0 0.0
    %268 = vmatpush1.msra.mxu0 0.0
    %269 = vmatprep.subr.mxu0 0.0
    %270 = vmatpush1.msra.mxu0 0.0
    %271 = vmatprep.subr.mxu0 0.0
    %272 = vmatpush1.msra.mxu0 0.0
    %273 = vmatprep.subr.mxu0 0.0
    %274 = vmatpush1.msra.mxu0 0.0
    %275 = vmatprep.subr.mxu0 0.0
    %276 = vmatpush1.msra.mxu0 0.0
    %277 = vmatprep.subr.mxu0 0.0
    %278 = vmatpush1.msra.mxu0 0.0
    %279 = vmatprep.subr.mxu0 0.0
    %280 = vmatpush1.msra.mxu0 0.0
    %281 = vmatprep.subr.mxu0 0.0
    %282 = vmatpush1.msra.mxu0 0.0
    %283 = vmatprep.subr.mxu0 0.0
    %284 = vmatpush1.msra.mxu0 0.0
    %285 = vmatprep.subr.mxu0 0.0
    %286 = vmatpush1.msra.mxu0 0.0
    %287 = vmatprep.mubr.f32.mxu0 0.0
    %288 = vmatmul.mubr.f32.gmra.mrb[0].mxu0 %v202
    %v289 = vpop.f32.mrb[0].mxu0
    %v290 = vadd.f32 %v222, %v289
    %v291 = vpop.f32.mrb[0].mxu0
    %292 = vdwg.mxu0
    %293 = vadd.xlane.f32.xlu0 %v290
    %v294 = vpop.xlane.xlu0 %293
    %v295 = vmul.f32 %v294, 0.03125
    %v296 = vsub.f32 %v290, %v295
    %v297 = vmul.f32 %v296, %v81
    %v298 = vmul.f32 %v297, %v297
    %299 = vadd.xlane.f32.xlu0 %v298
    %v300 = vpop.xlane.xlu0 %299
    %v301 = vmul.f32 %v300, 0.03125
    %v302 = vadd.f32 %v301, 1e-05
    %v303 = vrsqrt.pop %v302
    %v304 = vmul.f32 %v296, %v303
    %v305 = vlaneseq
    %v306 = vshrl.u32 %v305, 7
    %v307 = vsub.s32 0, %v306
    %v308 = vrot.slane %v86, %v307
    %v309 = vmul.f32 %v304, %v308
    %v310 = vlaneseq
    %v311 = vshrl.u32 %v310, 7
    %v312 = vsub.s32 0, %v311
    %v313 = vrot.slane %v87, %v312
    %v314 = vadd.f32 %v309, %v313
    %v315 = vmax.f32 %v314, 0.0
    %v316 = vld [vmem:[#allocation8] sm:$0xff]
    %v317 = vld [vmem:[#allocation8 + $0x8] sm:$0xff]
    %v318 = vld [vmem:[#allocation8 + $0x10] sm:$0xff]
    %v319 = vld [vmem:[#allocation8 + $0x18] sm:$0xff]
    %v320 = vld [vmem:[#allocation8 + $0x20] sm:$0xff]
    %v321 = vld [vmem:[#allocation8 + $0x28] sm:$0xff]
    %v322 = vld [vmem:[#allocation8 + $0x30] sm:$0xff]
    %v323 = vld [vmem:[#allocation8 + $0x38] sm:$0xff]
    %v324 = vld [vmem:[#allocation8 + $0x40] sm:$0xff]
    %v325 = vld [vmem:[#allocation8 + $0x48] sm:$0xff]
    %v326 = vld [vmem:[#allocation8 + $0x50] sm:$0xff]
    %v327 = vld [vmem:[#allocation8 + $0x58] sm:$0xff]
    %v328 = vld [vmem:[#allocation8 + $0x60] sm:$0xff]
    %v329 = vld [vmem:[#allocation8 + $0x68] sm:$0xff]
    %v330 = vld [vmem:[#allocation8 + $0x70] sm:$0xff]
    %v331 = vld [vmem:[#allocation8 + $0x78] sm:$0xff]
    %v332 = vlaneseq
    %v333 = vshrl.u32 %v332, 7
    %v334 = vsub.s32 0, %v333
    %v335 = vrot.slane %v88, %v334
    %336 = vmatprep.subr.mxu0 0.0
    %337 = vmatpush1.msra.mxu0 %v316
    %338 = vmatprep.subr.mxu0 0.0
    %339 = vmatpush1.msra.mxu0 %v317
    %340 = vmatprep.subr.mxu0 0.0
    %341 = vmatpush1.msra.mxu0 %v318
    %342 = vmatprep.subr.mxu0 0.0
    %343 = vmatpush1.msra.mxu0 %v319
    %344 = vmatprep.subr.mxu0 0.0
    %345 = vmatpush1.msra.mxu0 %v320
    %346 = vmatprep.subr.mxu0 0.0
    %347 = vmatpush1.msra.mxu0 %v321
    %348 = vmatprep.subr.mxu0 0.0
    %349 = vmatpush1.msra.mxu0 %v322
    %350 = vmatprep.subr.mxu0 0.0
    %351 = vmatpush1.msra.mxu0 %v323
    %352 = vmatprep.subr.mxu0 0.0
    %353 = vmatpush1.msra.mxu0 %v324
    %354 = vmatprep.subr.mxu0 0.0
    %355 = vmatpush1.msra.mxu0 %v325
    %356 = vmatprep.subr.mxu0 0.0
    %357 = vmatpush1.msra.mxu0 %v326
    %358 = vmatprep.subr.mxu0 0.0
    %359 = vmatpush1.msra.mxu0 %v327
    %360 = vmatprep.subr.mxu0 0.0
    %361 = vmatpush1.msra.mxu0 %v328
    %362 = vmatprep.subr.mxu0 0.0
    %363 = vmatpush1.msra.mxu0 %v329
    %364 = vmatprep.subr.mxu0 0.0
    %365 = vmatpush1.msra.mxu0 %v330
    %366 = vmatprep.subr.mxu0 0.0
    %367 = vmatpush1.msra.mxu0 %v331
    %368 = vmatprep.subr.mxu0 0.0
    %369 = vmatpush1.msra.mxu0 0.0
    %370 = vmatprep.subr.mxu0 0.0
    %371 = vmatpush1.msra.mxu0 0.0
    %372 = vmatprep.subr.mxu0 0.0
    %373 = vmatpush1.msra.mxu0 0.0
    %374 = vmatprep.subr.mxu0 0.0
    %375 = vmatpush1.msra.mxu0 0.0
    %376 = vmatprep.subr.mxu0 0.0
    %377 = vmatpush1.msra.mxu0 0.0
    %378 = vmatprep.subr.mxu0 0.0
    %379 = vmatpush1.msra.mxu0 0.0
    %380 = vmatprep.subr.mxu0 0.0
    %381 = vmatpush1.msra.mxu0 0.0
    %382 = vmatprep.subr.mxu0 0.0
    %383 = vmatpush1.msra.mxu0 0.0
    %384 = vmatprep.subr.mxu0 0.0
    %385 = vmatpush1.msra.mxu0 0.0
    %386 = vmatprep.subr.mxu0 0.0
    %387 = vmatpush1.msra.mxu0 0.0
    %388 = vmatprep.subr.mxu0 0.0
    %389 = vmatpush1.msra.mxu0 0.0
    %390 = vmatprep.subr.mxu0 0.0
    %391 = vmatpush1.msra.mxu0 0.0
    %392 = vmatprep.subr.mxu0 0.0
    %393 = vmatpush1.msra.mxu0 0.0
    %394 = vmatprep.subr.mxu0 0.0
    %395 = vmatpush1.msra.mxu0 0.0
    %396 = vmatprep.subr.mxu0 0.0
    %397 = vmatpush1.msra.mxu0 0.0
    %398 = vmatprep.subr.mxu0 0.0
    %399 = vmatpush1.msra.mxu0 0.0
    %400 = vmatprep.mubr.f32.mxu0 0.0
    %401 = vmatmul.mubr.f32.gmra.mrb[0].mxu0 %v315
    %v402 = vpop.f32.mrb[0].mxu0
    %v403 = vadd.f32 %v335, %v402
    %v404 = vpop.f32.mrb[0].mxu0
    %405 = vdwg.mxu0
    %v406 = vtanh.pop %v403
    %407 = vst [vmem:[#allocation10] sm:$0xff] %v406
    // Predicated region
    $region38: #{tpu_custom_call.1} parent=1 // pred_check
      _
    $region39: #{tpu_custom_call.1} parent=1 // pred_check_branch
      %409 = sbr.rel (0) target = $region41
    $region40: #{tpu_custom_call.1} parent=1 // pred_region
      %s411 = ssub.s32 128, 128
      %412 = vsyncadd [#allocation4], %s411
      %s414 = sshll.u32 [#allocation10], 4
      %s415 = int_to_ptr.vmem [resolvable:$true] %s414
      %417 = dma.vmem_to_hbm [thread:$0]  %s415, 128, %s5, [#allocation4]
    $region41: #{tpu_custom_call.1} parent=1 // pred_fallthru
      _
    // Predicated region
    $region42: #{tpu_custom_call.1} parent=1 // pred_check
      _
    $region43: #{tpu_custom_call.1} parent=1 // pred_check_branch
      %419 = sbr.rel (0) target = $region45
    $region44: #{tpu_custom_call.1} parent=1 // pred_region
      %420 = dma.done [#allocation4], 128
    $region45: #{tpu_custom_call.1} parent=1 // pred_fallthru
      _
    %421 = vsyncpa [#allocation3], 1
    %422 = vsyncpa [#allocation6], 1
    %423 = vsyncpa [#allocation9], 1
    %424 = vsyncpa [#allocation4], 1

</llo_original>
